<compile_context>
chip_gen: v6e
topology: v6e:2x2x1
jax: 0.10.0
libtpu: 0.0.40
codegen_flags: <defaults>
</compile_context>

<pallas_src>
import functools

import jax
import jax.numpy as jnp
from jax.experimental import pallas as pl
from jax.experimental.pallas import tpu as pltpu

C_IN = 3            # Conv2d(12, 3, 1)  =>  4*C_IN == 12  =>  C_IN == 3
C_CAT = 4 * C_IN    # channels of concat([maxpool, avgpool, x_delta, y_delta])


def dcp_kernel(x_ref, w_ref, b_ref, o_ref, *, H, W):
    C = x_ref.shape[0]                        # block = (C, H, W), batch squeezed
    x = x_ref[...].astype(jnp.float32)

    # Boundary masks, built once per grid step and reused for every branch.
    col = jax.lax.broadcasted_iota(jnp.int32, (C, H, W), 2)
    row = jax.lax.broadcasted_iota(jnp.int32, (C, H, W), 1)
    m_w_gt0 = col > 0                          # (h, w-1) in bounds
    m_w_lt = col < W - 1                       # (h, w+1) in bounds
    m_h_gt0 = row > 0                          # (h-1, w) in bounds
    m_h_lt = row < H - 1                       # (h+1, w) in bounds

    neg_inf = jnp.float32(float("-inf"))
    zero = jnp.float32(0.0)
    inv9 = jnp.float32(1.0 / 9.0)
    inv_hw = jnp.float32(1.0 / (H * W))

    # Lane rolls (W direction); roll(x, s)[..., w] == x[..., w - s] (mod W),
    # wrap-around stays inside the same row and is removed by the masks.
    x_l = pltpu.roll(x, 1, axis=2)             # value at (h, w-1)
    x_r = pltpu.roll(x, W - 1, axis=2)         # value at (h, w+1)

    # --- separable 3x3 pooling: horizontal (W) pass --------------------------
    hmax = jnp.maximum(
        x, jnp.maximum(jnp.where(m_w_gt0, x_l, neg_inf),
                       jnp.where(m_w_lt, x_r, neg_inf)))
    hsum = (x + jnp.where(m_w_gt0, x_l, zero)
              + jnp.where(m_w_lt, x_r, zero))

    # --- vertical (H) pass: sublane rolls ------------------------------------
    hmax_u = pltpu.roll(hmax, 1, axis=1)       # row h-1
    hmax_d = pltpu.roll(hmax, H - 1, axis=1)   # row h+1
    x1 = jnp.maximum(                          # MaxPool2d(3, 1, 1), -inf padding
        hmax, jnp.maximum(jnp.where(m_h_gt0, hmax_u, neg_inf),
                          jnp.where(m_h_lt, hmax_d, neg_inf)))
    hsum_u = pltpu.roll(hsum, 1, axis=1)
    hsum_d = pltpu.roll(hsum, H - 1, axis=1)
    x2 = (hsum + jnp.where(m_h_gt0, hsum_u, zero)   # AvgPool2d(3,1,1), zero pad,
                + jnp.where(m_h_lt, hsum_d, zero)) * inv9  # count_include_pad

    # --- forward differences (first column / first row stay zero) ------------
    x_delta = jnp.where(m_w_gt0, x - x_l, zero)
    x_u = pltpu.roll(x, 1, axis=1)
    y_delta = jnp.where(m_h_gt0, x - x_u, zero)

    # --- fused 1x1 conv (12 -> 3), SE scale, residual -------------------------
    # VPU scalar-broadcast FMAs over dense (H, W) slabs; weights/bias in SMEM.
    for o in range(C):
        xs_o = b_ref[o] + zero                 # scalar, broadcasts on first add
        for c in range(C):
            xs_o = (xs_o
                    + w_ref[o, c] * x1[c]
                    + w_ref[o, C + c] * x2[c]
                    + w_ref[o, 2 * C + c] * x_delta[c]
                    + w_ref[o, 3 * C + c] * y_delta[c])
        # AdaptiveAvgPool2d(1) -> SE-style scale -> residual add.
        s_o = jnp.sum(xs_o) * inv_hw
        o_ref[o] = (xs_o * s_o + x[o]).astype(o_ref.dtype)


def dcp_forward(x, w, b):
    """x: (B, C, H, W); w: (3, 12) 1x1-conv weight; b: (3,) bias."""
    B, C, H, W = x.shape
    assert C == C_IN

    n = B * C * H * W
    cost = pl.CostEstimate(
        flops=50 * n,                          # pooling + deltas + fused 1x1 conv
        transcendentals=0,
        bytes_accessed=int(2 * n * x.dtype.itemsize + (w.size + b.size) * 4),
    )

    return pl.pallas_call(
        functools.partial(dcp_kernel, H=H, W=W),
        out_shape=jax.ShapeDtypeStruct((B, C, H, W), x.dtype),
        grid=(B,),
        in_specs=[
            pl.BlockSpec((None, C, H, W), lambda bi: (bi, 0, 0, 0)),
            pl.BlockSpec(memory_space=pltpu.MemorySpace.SMEM),   # conv weight (3, 12)
            pl.BlockSpec(memory_space=pltpu.MemorySpace.SMEM),   # conv bias (3,)
        ],
        out_specs=pl.BlockSpec((None, C, H, W), lambda bi: (bi, 0, 0, 0)),
        compiler_params=pltpu.CompilerParams(
            dimension_semantics=("parallel",),
            vmem_limit_bytes=32 * 1024 * 1024,
        ),
        cost_estimate=cost,
    )(x, w, b)


def _reference(x, w, b):
    # Pure-JAX mirror of the PyTorch DCP forward, for a sanity check.
    B, C, H, W = x.shape
    x_delta = jnp.zeros_like(x).at[:, :, :, 1:].set(x[:, :, :, 1:] - x[:, :, :, :-1])
    y_delta = jnp.zeros_like(x).at[:, :, 1:, :].set(x[:, :, 1:, :] - x[:, :, :-1, :])
    xpm = jnp.pad(x, ((0, 0), (0, 0), (1, 1), (1, 1)), constant_values=-jnp.inf)
    x1 = jnp.max(jnp.stack([xpm[:, :, i:i + H, j:j + W]
                            for i in range(3) for j in range(3)]), axis=0)
    xpz = jnp.pad(x, ((0, 0), (0, 0), (1, 1), (1, 1)))
    x2 = sum(xpz[:, :, i:i + H, j:j + W]
             for i in range(3) for j in range(3)) / 9.0
    cat = jnp.concatenate([x1, x2, x_delta, y_delta], axis=1)   # (B, 12, H, W)
    xs = jnp.einsum('oc,bchw->bohw', w, cat) + b[None, :, None, None]
    s_ = jnp.mean(xs, axis=(2, 3), keepdims=True)
    return xs * s_ + x


if __name__ == "__main__":
    key = jax.random.PRNGKey(0)
    kx, kw, kb = jax.random.split(key, 3)

    B, C, H, W = 2, 3, 16, 16
    x = jax.random.normal(kx, (B, C, H, W), jnp.float32)

    # Conv2d(12, 3, 1) params: weight (3, 12, 1, 1) squeezed to (3, 12), bias (3,)
    w = jax.random.normal(kw, (C_IN, C_CAT), jnp.float32) * 0.1
    b = jax.random.normal(kb, (C_IN,), jnp.float32) * 0.1

    out = jax.block_until_ready(dcp_forward(x, w, b))
    ref = _reference(x, w, b)
    assert out.shape == x.shape
    assert jnp.allclose(out, ref, atol=1e-5, rtol=1e-5), "mismatch vs JAX reference"
    print("KERNEL_OK")
</pallas_src>

<mosaic_0001>
module attributes {stable_mosaic.version = 11 : i64} {
  func.func @dcp_kernel(%arg0: i32, %arg1: memref<1x3x16x16xf32, #tpu.memory_space<vmem>>, %arg2: memref<3x12xf32, #tpu.memory_space<smem>>, %arg3: memref<3xf32, #tpu.memory_space<smem>>, %arg4: memref<1x3x16x16xf32, #tpu.memory_space<vmem>>) attributes {dimension_semantics = [#tpu.dimension_semantics<parallel>], iteration_bounds = array<i64: 2>, scalar_prefetch = 0 : i64, scratch_operands = 0 : i64, tpu.core_type = #tpu.core_type<tc>, window_params = [{transform_indices = @transform_0, window_bounds = array<i64: 1, 3, 16, 16>}, {transform_indices = @transform_1, window_bounds = array<i64: 3, 12>}, {transform_indices = @transform_2, window_bounds = array<i64: 3>}, {transform_indices = @transform_3, window_bounds = array<i64: 1, 3, 16, 16>}]} {
    %c0 = arith.constant 0 : index
    %c0_0 = arith.constant 0 : index
    %c0_1 = arith.constant 0 : index
    %c0_2 = arith.constant 0 : index
    %0 = vector.load %arg1[%c0, %c0_0, %c0_1, %c0_2] : memref<1x3x16x16xf32, #tpu.memory_space<vmem>>, vector<1x3x16x16xf32>
    %1 = vector.shape_cast %0 : vector<1x3x16x16xf32> to vector<3x16x16xf32>
    %2 = tpu.iota {dimensions = array<i32: 2>} : vector<3x16x16xi32>
    %3 = tpu.iota {dimensions = array<i32: 1>} : vector<3x16x16xi32>
    %c0_i32 = arith.constant 0 : i32
    %4 = vector.broadcast %c0_i32 : i32 to vector<3x16x16xi32>
    %5 = arith.cmpi sgt, %2, %4 : vector<3x16x16xi32>
    %c15_i32 = arith.constant 15 : i32
    %6 = vector.broadcast %c15_i32 : i32 to vector<3x16x16xi32>
    %7 = arith.cmpi slt, %2, %6 : vector<3x16x16xi32>
    %c0_i32_3 = arith.constant 0 : i32
    %8 = vector.broadcast %c0_i32_3 : i32 to vector<3x16x16xi32>
    %9 = arith.cmpi sgt, %3, %8 : vector<3x16x16xi32>
    %c15_i32_4 = arith.constant 15 : i32
    %10 = vector.broadcast %c15_i32_4 : i32 to vector<3x16x16xi32>
    %11 = arith.cmpi slt, %3, %10 : vector<3x16x16xi32>
    %c1_i32 = arith.constant 1 : i32
    %12 = tpu.dynamic_rotate %1 by %c1_i32 dim 2 : vector<3x16x16xf32>, i32 -> vector<3x16x16xf32>
    %c15_i32_5 = arith.constant 15 : i32
    %13 = tpu.dynamic_rotate %1 by %c15_i32_5 dim 2 : vector<3x16x16xf32>, i32 -> vector<3x16x16xf32>
    %cst = arith.constant 0xFF800000 : f32
    %14 = vector.broadcast %cst : f32 to vector<3x16x16xf32>
    %15 = arith.select %5, %12, %14 : vector<3x16x16xi1>, vector<3x16x16xf32>
    %cst_6 = arith.constant 0xFF800000 : f32
    %16 = vector.broadcast %cst_6 : f32 to vector<3x16x16xf32>
    %17 = arith.select %7, %13, %16 : vector<3x16x16xi1>, vector<3x16x16xf32>
    %18 = arith.maximumf %15, %17 : vector<3x16x16xf32>
    %19 = arith.maximumf %1, %18 : vector<3x16x16xf32>
    %cst_7 = arith.constant 0.000000e+00 : f32
    %20 = vector.broadcast %cst_7 : f32 to vector<3x16x16xf32>
    %21 = arith.select %5, %12, %20 : vector<3x16x16xi1>, vector<3x16x16xf32>
    %22 = arith.addf %1, %21 : vector<3x16x16xf32>
    %cst_8 = arith.constant 0.000000e+00 : f32
    %23 = vector.broadcast %cst_8 : f32 to vector<3x16x16xf32>
    %24 = arith.select %7, %13, %23 : vector<3x16x16xi1>, vector<3x16x16xf32>
    %25 = arith.addf %22, %24 : vector<3x16x16xf32>
    %c1_i32_9 = arith.constant 1 : i32
    %26 = tpu.dynamic_rotate %19 by %c1_i32_9 dim 1 : vector<3x16x16xf32>, i32 -> vector<3x16x16xf32>
    %c15_i32_10 = arith.constant 15 : i32
    %27 = tpu.dynamic_rotate %19 by %c15_i32_10 dim 1 : vector<3x16x16xf32>, i32 -> vector<3x16x16xf32>
    %cst_11 = arith.constant 0xFF800000 : f32
    %28 = vector.broadcast %cst_11 : f32 to vector<3x16x16xf32>
    %29 = arith.select %9, %26, %28 : vector<3x16x16xi1>, vector<3x16x16xf32>
    %cst_12 = arith.constant 0xFF800000 : f32
    %30 = vector.broadcast %cst_12 : f32 to vector<3x16x16xf32>
    %31 = arith.select %11, %27, %30 : vector<3x16x16xi1>, vector<3x16x16xf32>
    %32 = arith.maximumf %29, %31 : vector<3x16x16xf32>
    %33 = arith.maximumf %19, %32 : vector<3x16x16xf32>
    %c1_i32_13 = arith.constant 1 : i32
    %34 = tpu.dynamic_rotate %25 by %c1_i32_13 dim 1 : vector<3x16x16xf32>, i32 -> vector<3x16x16xf32>
    %c15_i32_14 = arith.constant 15 : i32
    %35 = tpu.dynamic_rotate %25 by %c15_i32_14 dim 1 : vector<3x16x16xf32>, i32 -> vector<3x16x16xf32>
    %cst_15 = arith.constant 0.000000e+00 : f32
    %36 = vector.broadcast %cst_15 : f32 to vector<3x16x16xf32>
    %37 = arith.select %9, %34, %36 : vector<3x16x16xi1>, vector<3x16x16xf32>
    %38 = arith.addf %25, %37 : vector<3x16x16xf32>
    %cst_16 = arith.constant 0.000000e+00 : f32
    %39 = vector.broadcast %cst_16 : f32 to vector<3x16x16xf32>
    %40 = arith.select %11, %35, %39 : vector<3x16x16xi1>, vector<3x16x16xf32>
    %41 = arith.addf %38, %40 : vector<3x16x16xf32>
    %cst_17 = arith.constant 0.111111112 : f32
    %42 = vector.broadcast %cst_17 : f32 to vector<3x16x16xf32>
    %43 = arith.mulf %41, %42 : vector<3x16x16xf32>
    %44 = arith.subf %1, %12 : vector<3x16x16xf32>
    %cst_18 = arith.constant 0.000000e+00 : f32
    %45 = vector.broadcast %cst_18 : f32 to vector<3x16x16xf32>
    %46 = arith.select %5, %44, %45 : vector<3x16x16xi1>, vector<3x16x16xf32>
    %c1_i32_19 = arith.constant 1 : i32
    %47 = tpu.dynamic_rotate %1 by %c1_i32_19 dim 1 : vector<3x16x16xf32>, i32 -> vector<3x16x16xf32>
    %48 = arith.subf %1, %47 : vector<3x16x16xf32>
    %cst_20 = arith.constant 0.000000e+00 : f32
    %49 = vector.broadcast %cst_20 : f32 to vector<3x16x16xf32>
    %50 = arith.select %9, %48, %49 : vector<3x16x16xi1>, vector<3x16x16xf32>
    %c0_21 = arith.constant 0 : index
    %51 = memref.load %arg3[%c0_21] : memref<3xf32, #tpu.memory_space<smem>>
    %cst_22 = arith.constant 0.000000e+00 : f32
    %52 = arith.addf %51, %cst_22 : f32
    %c0_23 = arith.constant 0 : index
    %c0_24 = arith.constant 0 : index
    %53 = memref.load %arg2[%c0_23, %c0_24] : memref<3x12xf32, #tpu.memory_space<smem>>
    %54 = vector.extract_strided_slice %33 {offsets = [0, 0, 0], sizes = [1, 16, 16], strides = [1, 1, 1]} : vector<3x16x16xf32> to vector<1x16x16xf32>
    %55 = vector.shape_cast %54 : vector<1x16x16xf32> to vector<16x16xf32>
    %56 = vector.broadcast %53 : f32 to vector<16x16xf32>
    %57 = arith.mulf %56, %55 : vector<16x16xf32>
    %58 = vector.broadcast %52 : f32 to vector<16x16xf32>
    %59 = arith.addf %58, %57 : vector<16x16xf32>
    %c0_25 = arith.constant 0 : index
    %c3 = arith.constant 3 : index
    %60 = memref.load %arg2[%c0_25, %c3] : memref<3x12xf32, #tpu.memory_space<smem>>
    %61 = vector.extract_strided_slice %43 {offsets = [0, 0, 0], sizes = [1, 16, 16], strides = [1, 1, 1]} : vector<3x16x16xf32> to vector<1x16x16xf32>
    %62 = vector.shape_cast %61 : vector<1x16x16xf32> to vector<16x16xf32>
    %63 = vector.broadcast %60 : f32 to vector<16x16xf32>
    %64 = arith.mulf %63, %62 : vector<16x16xf32>
    %65 = arith.addf %59, %64 : vector<16x16xf32>
    %c0_26 = arith.constant 0 : index
    %c6 = arith.constant 6 : index
    %66 = memref.load %arg2[%c0_26, %c6] : memref<3x12xf32, #tpu.memory_space<smem>>
    %67 = vector.extract_strided_slice %46 {offsets = [0, 0, 0], sizes = [1, 16, 16], strides = [1, 1, 1]} : vector<3x16x16xf32> to vector<1x16x16xf32>
    %68 = vector.shape_cast %67 : vector<1x16x16xf32> to vector<16x16xf32>
    %69 = vector.broadcast %66 : f32 to vector<16x16xf32>
    %70 = arith.mulf %69, %68 : vector<16x16xf32>
    %71 = arith.addf %65, %70 : vector<16x16xf32>
    %c0_27 = arith.constant 0 : index
    %c9 = arith.constant 9 : index
    %72 = memref.load %arg2[%c0_27, %c9] : memref<3x12xf32, #tpu.memory_space<smem>>
    %73 = vector.extract_strided_slice %50 {offsets = [0, 0, 0], sizes = [1, 16, 16], strides = [1, 1, 1]} : vector<3x16x16xf32> to vector<1x16x16xf32>
    %74 = vector.shape_cast %73 : vector<1x16x16xf32> to vector<16x16xf32>
    %75 = vector.broadcast %72 : f32 to vector<16x16xf32>
    %76 = arith.mulf %75, %74 : vector<16x16xf32>
    %77 = arith.addf %71, %76 : vector<16x16xf32>
    %c0_28 = arith.constant 0 : index
    %c1 = arith.constant 1 : index
    %78 = memref.load %arg2[%c0_28, %c1] : memref<3x12xf32, #tpu.memory_space<smem>>
    %79 = vector.extract_strided_slice %33 {offsets = [1, 0, 0], sizes = [1, 16, 16], strides = [1, 1, 1]} : vector<3x16x16xf32> to vector<1x16x16xf32>
    %80 = vector.shape_cast %79 : vector<1x16x16xf32> to vector<16x16xf32>
    %81 = vector.broadcast %78 : f32 to vector<16x16xf32>
    %82 = arith.mulf %81, %80 : vector<16x16xf32>
    %83 = arith.addf %77, %82 : vector<16x16xf32>
    %c0_29 = arith.constant 0 : index
    %c4 = arith.constant 4 : index
    %84 = memref.load %arg2[%c0_29, %c4] : memref<3x12xf32, #tpu.memory_space<smem>>
    %85 = vector.extract_strided_slice %43 {offsets = [1, 0, 0], sizes = [1, 16, 16], strides = [1, 1, 1]} : vector<3x16x16xf32> to vector<1x16x16xf32>
    %86 = vector.shape_cast %85 : vector<1x16x16xf32> to vector<16x16xf32>
    %87 = vector.broadcast %84 : f32 to vector<16x16xf32>
    %88 = arith.mulf %87, %86 : vector<16x16xf32>
    %89 = arith.addf %83, %88 : vector<16x16xf32>
    %c0_30 = arith.constant 0 : index
    %c7 = arith.constant 7 : index
    %90 = memref.load %arg2[%c0_30, %c7] : memref<3x12xf32, #tpu.memory_space<smem>>
    %91 = vector.extract_strided_slice %46 {offsets = [1, 0, 0], sizes = [1, 16, 16], strides = [1, 1, 1]} : vector<3x16x16xf32> to vector<1x16x16xf32>
    %92 = vector.shape_cast %91 : vector<1x16x16xf32> to vector<16x16xf32>
    %93 = vector.broadcast %90 : f32 to vector<16x16xf32>
    %94 = arith.mulf %93, %92 : vector<16x16xf32>
    %95 = arith.addf %89, %94 : vector<16x16xf32>
    %c0_31 = arith.constant 0 : index
    %c10 = arith.constant 10 : index
    %96 = memref.load %arg2[%c0_31, %c10] : memref<3x12xf32, #tpu.memory_space<smem>>
    %97 = vector.extract_strided_slice %50 {offsets = [1, 0, 0], sizes = [1, 16, 16], strides = [1, 1, 1]} : vector<3x16x16xf32> to vector<1x16x16xf32>
    %98 = vector.shape_cast %97 : vector<1x16x16xf32> to vector<16x16xf32>
    %99 = vector.broadcast %96 : f32 to vector<16x16xf32>
    %100 = arith.mulf %99, %98 : vector<16x16xf32>
    %101 = arith.addf %95, %100 : vector<16x16xf32>
    %c0_32 = arith.constant 0 : index
    %c2 = arith.constant 2 : index
    %102 = memref.load %arg2[%c0_32, %c2] : memref<3x12xf32, #tpu.memory_space<smem>>
    %103 = vector.extract_strided_slice %33 {offsets = [2, 0, 0], sizes = [1, 16, 16], strides = [1, 1, 1]} : vector<3x16x16xf32> to vector<1x16x16xf32>
    %104 = vector.shape_cast %103 : vector<1x16x16xf32> to vector<16x16xf32>
    %105 = vector.broadcast %102 : f32 to vector<16x16xf32>
    %106 = arith.mulf %105, %104 : vector<16x16xf32>
    %107 = arith.addf %101, %106 : vector<16x16xf32>
    %c0_33 = arith.constant 0 : index
    %c5 = arith.constant 5 : index
    %108 = memref.load %arg2[%c0_33, %c5] : memref<3x12xf32, #tpu.memory_space<smem>>
    %109 = vector.extract_strided_slice %43 {offsets = [2, 0, 0], sizes = [1, 16, 16], strides = [1, 1, 1]} : vector<3x16x16xf32> to vector<1x16x16xf32>
    %110 = vector.shape_cast %109 : vector<1x16x16xf32> to vector<16x16xf32>
    %111 = vector.broadcast %108 : f32 to vector<16x16xf32>
    %112 = arith.mulf %111, %110 : vector<16x16xf32>
    %113 = arith.addf %107, %112 : vector<16x16xf32>
    %c0_34 = arith.constant 0 : index
    %c8 = arith.constant 8 : index
    %114 = memref.load %arg2[%c0_34, %c8] : memref<3x12xf32, #tpu.memory_space<smem>>
    %115 = vector.extract_strided_slice %46 {offsets = [2, 0, 0], sizes = [1, 16, 16], strides = [1, 1, 1]} : vector<3x16x16xf32> to vector<1x16x16xf32>
    %116 = vector.shape_cast %115 : vector<1x16x16xf32> to vector<16x16xf32>
    %117 = vector.broadcast %114 : f32 to vector<16x16xf32>
    %118 = arith.mulf %117, %116 : vector<16x16xf32>
    %119 = arith.addf %113, %118 : vector<16x16xf32>
    %c0_35 = arith.constant 0 : index
    %c11 = arith.constant 11 : index
    %120 = memref.load %arg2[%c0_35, %c11] : memref<3x12xf32, #tpu.memory_space<smem>>
    %121 = vector.extract_strided_slice %50 {offsets = [2, 0, 0], sizes = [1, 16, 16], strides = [1, 1, 1]} : vector<3x16x16xf32> to vector<1x16x16xf32>
    %122 = vector.shape_cast %121 : vector<1x16x16xf32> to vector<16x16xf32>
    %123 = vector.broadcast %120 : f32 to vector<16x16xf32>
    %124 = arith.mulf %123, %122 : vector<16x16xf32>
    %125 = arith.addf %119, %124 : vector<16x16xf32>
    %126 = vector.shape_cast %125 : vector<16x16xf32> to vector<1x16x16xf32>
    %cst_36 = arith.constant dense<0.000000e+00> : vector<1xf32>
    %127 = vector.multi_reduction <add>, %126, %cst_36 [1, 2] : vector<1x16x16xf32> to vector<1xf32>
    %128 = vector.shape_cast %127 : vector<1xf32> to vector<1x1x1xf32>
    %129 = vector.extract %128[0, 0, 0] : f32 from vector<1x1x1xf32>
    %cst_37 = arith.constant 3.906250e-03 : f32
    %130 = arith.mulf %129, %cst_37 : f32
    %131 = vector.broadcast %130 : f32 to vector<16x16xf32>
    %132 = arith.mulf %125, %131 : vector<16x16xf32>
    %133 = vector.extract_strided_slice %1 {offsets = [0, 0, 0], sizes = [1, 16, 16], strides = [1, 1, 1]} : vector<3x16x16xf32> to vector<1x16x16xf32>
    %134 = vector.shape_cast %133 : vector<1x16x16xf32> to vector<16x16xf32>
    %135 = arith.addf %132, %134 : vector<16x16xf32>
    %c0_38 = arith.constant 0 : index
    %c0_39 = arith.constant 0 : index
    %c0_40 = arith.constant 0 : index
    %c0_41 = arith.constant 0 : index
    %136 = vector.load %arg4[%c0_38, %c0_39, %c0_40, %c0_41] : memref<1x3x16x16xf32, #tpu.memory_space<vmem>>, vector<1x1x16x16xf32>
    %137 = vector.shape_cast %136 : vector<1x1x16x16xf32> to vector<16x16xf32>
    %138 = vector.shape_cast %135 : vector<16x16xf32> to vector<1x1x16x16xf32>
    tpu.vector_store %arg4[%c0_38, %c0_39, %c0_40, %c0_41], %138 {strides = array<i32>} : memref<1x3x16x16xf32, #tpu.memory_space<vmem>>, vector<1x1x16x16xf32>,
    %c1_42 = arith.constant 1 : index
    %139 = memref.load %arg3[%c1_42] : memref<3xf32, #tpu.memory_space<smem>>
    %cst_43 = arith.constant 0.000000e+00 : f32
    %140 = arith.addf %139, %cst_43 : f32
    %c1_44 = arith.constant 1 : index
    %c0_45 = arith.constant 0 : index
    %141 = memref.load %arg2[%c1_44, %c0_45] : memref<3x12xf32, #tpu.memory_space<smem>>
    %142 = vector.extract_strided_slice %33 {offsets = [0, 0, 0], sizes = [1, 16, 16], strides = [1, 1, 1]} : vector<3x16x16xf32> to vector<1x16x16xf32>
    %143 = vector.shape_cast %142 : vector<1x16x16xf32> to vector<16x16xf32>
    %144 = vector.broadcast %141 : f32 to vector<16x16xf32>
    %145 = arith.mulf %144, %143 : vector<16x16xf32>
    %146 = vector.broadcast %140 : f32 to vector<16x16xf32>
    %147 = arith.addf %146, %145 : vector<16x16xf32>
    %c1_46 = arith.constant 1 : index
    %c3_47 = arith.constant 3 : index
    %148 = memref.load %arg2[%c1_46, %c3_47] : memref<3x12xf32, #tpu.memory_space<smem>>
    %149 = vector.extract_strided_slice %43 {offsets = [0, 0, 0], sizes = [1, 16, 16], strides = [1, 1, 1]} : vector<3x16x16xf32> to vector<1x16x16xf32>
    %150 = vector.shape_cast %149 : vector<1x16x16xf32> to vector<16x16xf32>
    %151 = vector.broadcast %148 : f32 to vector<16x16xf32>
    %152 = arith.mulf %151, %150 : vector<16x16xf32>
    %153 = arith.addf %147, %152 : vector<16x16xf32>
    %c1_48 = arith.constant 1 : index
    %c6_49 = arith.constant 6 : index
    %154 = memref.load %arg2[%c1_48, %c6_49] : memref<3x12xf32, #tpu.memory_space<smem>>
    %155 = vector.extract_strided_slice %46 {offsets = [0, 0, 0], sizes = [1, 16, 16], strides = [1, 1, 1]} : vector<3x16x16xf32> to vector<1x16x16xf32>
    %156 = vector.shape_cast %155 : vector<1x16x16xf32> to vector<16x16xf32>
    %157 = vector.broadcast %154 : f32 to vector<16x16xf32>
    %158 = arith.mulf %157, %156 : vector<16x16xf32>
    %159 = arith.addf %153, %158 : vector<16x16xf32>
    %c1_50 = arith.constant 1 : index
    %c9_51 = arith.constant 9 : index
    %160 = memref.load %arg2[%c1_50, %c9_51] : memref<3x12xf32, #tpu.memory_space<smem>>
    %161 = vector.extract_strided_slice %50 {offsets = [0, 0, 0], sizes = [1, 16, 16], strides = [1, 1, 1]} : vector<3x16x16xf32> to vector<1x16x16xf32>
    %162 = vector.shape_cast %161 : vector<1x16x16xf32> to vector<16x16xf32>
    %163 = vector.broadcast %160 : f32 to vector<16x16xf32>
    %164 = arith.mulf %163, %162 : vector<16x16xf32>
    %165 = arith.addf %159, %164 : vector<16x16xf32>
    %c1_52 = arith.constant 1 : index
    %c1_53 = arith.constant 1 : index
    %166 = memref.load %arg2[%c1_52, %c1_53] : memref<3x12xf32, #tpu.memory_space<smem>>
    %167 = vector.extract_strided_slice %33 {offsets = [1, 0, 0], sizes = [1, 16, 16], strides = [1, 1, 1]} : vector<3x16x16xf32> to vector<1x16x16xf32>
    %168 = vector.shape_cast %167 : vector<1x16x16xf32> to vector<16x16xf32>
    %169 = vector.broadcast %166 : f32 to vector<16x16xf32>
    %170 = arith.mulf %169, %168 : vector<16x16xf32>
    %171 = arith.addf %165, %170 : vector<16x16xf32>
    %c1_54 = arith.constant 1 : index
    %c4_55 = arith.constant 4 : index
    %172 = memref.load %arg2[%c1_54, %c4_55] : memref<3x12xf32, #tpu.memory_space<smem>>
    %173 = vector.extract_strided_slice %43 {offsets = [1, 0, 0], sizes = [1, 16, 16], strides = [1, 1, 1]} : vector<3x16x16xf32> to vector<1x16x16xf32>
    %174 = vector.shape_cast %173 : vector<1x16x16xf32> to vector<16x16xf32>
    %175 = vector.broadcast %172 : f32 to vector<16x16xf32>
    %176 = arith.mulf %175, %174 : vector<16x16xf32>
    %177 = arith.addf %171, %176 : vector<16x16xf32>
    %c1_56 = arith.constant 1 : index
    %c7_57 = arith.constant 7 : index
    %178 = memref.load %arg2[%c1_56, %c7_57] : memref<3x12xf32, #tpu.memory_space<smem>>
    %179 = vector.extract_strided_slice %46 {offsets = [1, 0, 0], sizes = [1, 16, 16], strides = [1, 1, 1]} : vector<3x16x16xf32> to vector<1x16x16xf32>
    %180 = vector.shape_cast %179 : vector<1x16x16xf32> to vector<16x16xf32>
    %181 = vector.broadcast %178 : f32 to vector<16x16xf32>
    %182 = arith.mulf %181, %180 : vector<16x16xf32>
    %183 = arith.addf %177, %182 : vector<16x16xf32>
    %c1_58 = arith.constant 1 : index
    %c10_59 = arith.constant 10 : index
    %184 = memref.load %arg2[%c1_58, %c10_59] : memref<3x12xf32, #tpu.memory_space<smem>>
    %185 = vector.extract_strided_slice %50 {offsets = [1, 0, 0], sizes = [1, 16, 16], strides = [1, 1, 1]} : vector<3x16x16xf32> to vector<1x16x16xf32>
    %186 = vector.shape_cast %185 : vector<1x16x16xf32> to vector<16x16xf32>
    %187 = vector.broadcast %184 : f32 to vector<16x16xf32>
    %188 = arith.mulf %187, %186 : vector<16x16xf32>
    %189 = arith.addf %183, %188 : vector<16x16xf32>
    %c1_60 = arith.constant 1 : index
    %c2_61 = arith.constant 2 : index
    %190 = memref.load %arg2[%c1_60, %c2_61] : memref<3x12xf32, #tpu.memory_space<smem>>
    %191 = vector.extract_strided_slice %33 {offsets = [2, 0, 0], sizes = [1, 16, 16], strides = [1, 1, 1]} : vector<3x16x16xf32> to vector<1x16x16xf32>
    %192 = vector.shape_cast %191 : vector<1x16x16xf32> to vector<16x16xf32>
    %193 = vector.broadcast %190 : f32 to vector<16x16xf32>
    %194 = arith.mulf %193, %192 : vector<16x16xf32>
    %195 = arith.addf %189, %194 : vector<16x16xf32>
    %c1_62 = arith.constant 1 : index
    %c5_63 = arith.constant 5 : index
    %196 = memref.load %arg2[%c1_62, %c5_63] : memref<3x12xf32, #tpu.memory_space<smem>>
    %197 = vector.extract_strided_slice %43 {offsets = [2, 0, 0], sizes = [1, 16, 16], strides = [1, 1, 1]} : vector<3x16x16xf32> to vector<1x16x16xf32>
    %198 = vector.shape_cast %197 : vector<1x16x16xf32> to vector<16x16xf32>
    %199 = vector.broadcast %196 : f32 to vector<16x16xf32>
    %200 = arith.mulf %199, %198 : vector<16x16xf32>
    %201 = arith.addf %195, %200 : vector<16x16xf32>
    %c1_64 = arith.constant 1 : index
    %c8_65 = arith.constant 8 : index
    %202 = memref.load %arg2[%c1_64, %c8_65] : memref<3x12xf32, #tpu.memory_space<smem>>
    %203 = vector.extract_strided_slice %46 {offsets = [2, 0, 0], sizes = [1, 16, 16], strides = [1, 1, 1]} : vector<3x16x16xf32> to vector<1x16x16xf32>
    %204 = vector.shape_cast %203 : vector<1x16x16xf32> to vector<16x16xf32>
    %205 = vector.broadcast %202 : f32 to vector<16x16xf32>
    %206 = arith.mulf %205, %204 : vector<16x16xf32>
    %207 = arith.addf %201, %206 : vector<16x16xf32>
    %c1_66 = arith.constant 1 : index
    %c11_67 = arith.constant 11 : index
    %208 = memref.load %arg2[%c1_66, %c11_67] : memref<3x12xf32, #tpu.memory_space<smem>>
    %209 = vector.extract_strided_slice %50 {offsets = [2, 0, 0], sizes = [1, 16, 16], strides = [1, 1, 1]} : vector<3x16x16xf32> to vector<1x16x16xf32>
    %210 = vector.shape_cast %209 : vector<1x16x16xf32> to vector<16x16xf32>
    %211 = vector.broadcast %208 : f32 to vector<16x16xf32>
    %212 = arith.mulf %211, %210 : vector<16x16xf32>
    %213 = arith.addf %207, %212 : vector<16x16xf32>
    %214 = vector.shape_cast %213 : vector<16x16xf32> to vector<1x16x16xf32>
    %cst_68 = arith.constant dense<0.000000e+00> : vector<1xf32>
    %215 = vector.multi_reduction <add>, %214, %cst_68 [1, 2] : vector<1x16x16xf32> to vector<1xf32>
    %216 = vector.shape_cast %215 : vector<1xf32> to vector<1x1x1xf32>
    %217 = vector.extract %216[0, 0, 0] : f32 from vector<1x1x1xf32>
    %cst_69 = arith.constant 3.906250e-03 : f32
    %218 = arith.mulf %217, %cst_69 : f32
    %219 = vector.broadcast %218 : f32 to vector<16x16xf32>
    %220 = arith.mulf %213, %219 : vector<16x16xf32>
    %221 = vector.extract_strided_slice %1 {offsets = [1, 0, 0], sizes = [1, 16, 16], strides = [1, 1, 1]} : vector<3x16x16xf32> to vector<1x16x16xf32>
    %222 = vector.shape_cast %221 : vector<1x16x16xf32> to vector<16x16xf32>
    %223 = arith.addf %220, %222 : vector<16x16xf32>
    %c0_70 = arith.constant 0 : index
    %c1_71 = arith.constant 1 : index
    %c0_72 = arith.constant 0 : index
    %c0_73 = arith.constant 0 : index
    %224 = vector.load %arg4[%c0_70, %c1_71, %c0_72, %c0_73] : memref<1x3x16x16xf32, #tpu.memory_space<vmem>>, vector<1x1x16x16xf32>
    %225 = vector.shape_cast %224 : vector<1x1x16x16xf32> to vector<16x16xf32>
    %226 = vector.shape_cast %223 : vector<16x16xf32> to vector<1x1x16x16xf32>
    tpu.vector_store %arg4[%c0_70, %c1_71, %c0_72, %c0_73], %226 {strides = array<i32>} : memref<1x3x16x16xf32, #tpu.memory_space<vmem>>, vector<1x1x16x16xf32>,
    %c2_74 = arith.constant 2 : index
    %227 = memref.load %arg3[%c2_74] : memref<3xf32, #tpu.memory_space<smem>>
    %cst_75 = arith.constant 0.000000e+00 : f32
    %228 = arith.addf %227, %cst_75 : f32
    %c2_76 = arith.constant 2 : index
    %c0_77 = arith.constant 0 : index
    %229 = memref.load %arg2[%c2_76, %c0_77] : memref<3x12xf32, #tpu.memory_space<smem>>
    %230 = vector.extract_strided_slice %33 {offsets = [0, 0, 0], sizes = [1, 16, 16], strides = [1, 1, 1]} : vector<3x16x16xf32> to vector<1x16x16xf32>
    %231 = vector.shape_cast %230 : vector<1x16x16xf32> to vector<16x16xf32>
    %232 = vector.broadcast %229 : f32 to vector<16x16xf32>
    %233 = arith.mulf %232, %231 : vector<16x16xf32>
    %234 = vector.broadcast %228 : f32 to vector<16x16xf32>
    %235 = arith.addf %234, %233 : vector<16x16xf32>
    %c2_78 = arith.constant 2 : index
    %c3_79 = arith.constant 3 : index
    %236 = memref.load %arg2[%c2_78, %c3_79] : memref<3x12xf32, #tpu.memory_space<smem>>
    %237 = vector.extract_strided_slice %43 {offsets = [0, 0, 0], sizes = [1, 16, 16], strides = [1, 1, 1]} : vector<3x16x16xf32> to vector<1x16x16xf32>
    %238 = vector.shape_cast %237 : vector<1x16x16xf32> to vector<16x16xf32>
    %239 = vector.broadcast %236 : f32 to vector<16x16xf32>
    %240 = arith.mulf %239, %238 : vector<16x16xf32>
    %241 = arith.addf %235, %240 : vector<16x16xf32>
    %c2_80 = arith.constant 2 : index
    %c6_81 = arith.constant 6 : index
    %242 = memref.load %arg2[%c2_80, %c6_81] : memref<3x12xf32, #tpu.memory_space<smem>>
    %243 = vector.extract_strided_slice %46 {offsets = [0, 0, 0], sizes = [1, 16, 16], strides = [1, 1, 1]} : vector<3x16x16xf32> to vector<1x16x16xf32>
    %244 = vector.shape_cast %243 : vector<1x16x16xf32> to vector<16x16xf32>
    %245 = vector.broadcast %242 : f32 to vector<16x16xf32>
    %246 = arith.mulf %245, %244 : vector<16x16xf32>
    %247 = arith.addf %241, %246 : vector<16x16xf32>
    %c2_82 = arith.constant 2 : index
    %c9_83 = arith.constant 9 : index
    %248 = memref.load %arg2[%c2_82, %c9_83] : memref<3x12xf32, #tpu.memory_space<smem>>
    %249 = vector.extract_strided_slice %50 {offsets = [0, 0, 0], sizes = [1, 16, 16], strides = [1, 1, 1]} : vector<3x16x16xf32> to vector<1x16x16xf32>
    %250 = vector.shape_cast %249 : vector<1x16x16xf32> to vector<16x16xf32>
    %251 = vector.broadcast %248 : f32 to vector<16x16xf32>
    %252 = arith.mulf %251, %250 : vector<16x16xf32>
    %253 = arith.addf %247, %252 : vector<16x16xf32>
    %c2_84 = arith.constant 2 : index
    %c1_85 = arith.constant 1 : index
    %254 = memref.load %arg2[%c2_84, %c1_85] : memref<3x12xf32, #tpu.memory_space<smem>>
    %255 = vector.extract_strided_slice %33 {offsets = [1, 0, 0], sizes = [1, 16, 16], strides = [1, 1, 1]} : vector<3x16x16xf32> to vector<1x16x16xf32>
    %256 = vector.shape_cast %255 : vector<1x16x16xf32> to vector<16x16xf32>
    %257 = vector.broadcast %254 : f32 to vector<16x16xf32>
    %258 = arith.mulf %257, %256 : vector<16x16xf32>
    %259 = arith.addf %253, %258 : vector<16x16xf32>
    %c2_86 = arith.constant 2 : index
    %c4_87 = arith.constant 4 : index
    %260 = memref.load %arg2[%c2_86, %c4_87] : memref<3x12xf32, #tpu.memory_space<smem>>
    %261 = vector.extract_strided_slice %43 {offsets = [1, 0, 0], sizes = [1, 16, 16], strides = [1, 1, 1]} : vector<3x16x16xf32> to vector<1x16x16xf32>
    %262 = vector.shape_cast %261 : vector<1x16x16xf32> to vector<16x16xf32>
    %263 = vector.broadcast %260 : f32 to vector<16x16xf32>
    %264 = arith.mulf %263, %262 : vector<16x16xf32>
    %265 = arith.addf %259, %264 : vector<16x16xf32>
    %c2_88 = arith.constant 2 : index
    %c7_89 = arith.constant 7 : index
    %266 = memref.load %arg2[%c2_88, %c7_89] : memref<3x12xf32, #tpu.memory_space<smem>>
    %267 = vector.extract_strided_slice %46 {offsets = [1, 0, 0], sizes = [1, 16, 16], strides = [1, 1, 1]} : vector<3x16x16xf32> to vector<1x16x16xf32>
    %268 = vector.shape_cast %267 : vector<1x16x16xf32> to vector<16x16xf32>
    %269 = vector.broadcast %266 : f32 to vector<16x16xf32>
    %270 = arith.mulf %269, %268 : vector<16x16xf32>
    %271 = arith.addf %265, %270 : vector<16x16xf32>
    %c2_90 = arith.constant 2 : index
    %c10_91 = arith.constant 10 : index
    %272 = memref.load %arg2[%c2_90, %c10_91] : memref<3x12xf32, #tpu.memory_space<smem>>
    %273 = vector.extract_strided_slice %50 {offsets = [1, 0, 0], sizes = [1, 16, 16], strides = [1, 1, 1]} : vector<3x16x16xf32> to vector<1x16x16xf32>
    %274 = vector.shape_cast %273 : vector<1x16x16xf32> to vector<16x16xf32>
    %275 = vector.broadcast %272 : f32 to vector<16x16xf32>
    %276 = arith.mulf %275, %274 : vector<16x16xf32>
    %277 = arith.addf %271, %276 : vector<16x16xf32>
    %c2_92 = arith.constant 2 : index
    %c2_93 = arith.constant 2 : index
    %278 = memref.load %arg2[%c2_92, %c2_93] : memref<3x12xf32, #tpu.memory_space<smem>>
    %279 = vector.extract_strided_slice %33 {offsets = [2, 0, 0], sizes = [1, 16, 16], strides = [1, 1, 1]} : vector<3x16x16xf32> to vector<1x16x16xf32>
    %280 = vector.shape_cast %279 : vector<1x16x16xf32> to vector<16x16xf32>
    %281 = vector.broadcast %278 : f32 to vector<16x16xf32>
    %282 = arith.mulf %281, %280 : vector<16x16xf32>
    %283 = arith.addf %277, %282 : vector<16x16xf32>
    %c2_94 = arith.constant 2 : index
    %c5_95 = arith.constant 5 : index
    %284 = memref.load %arg2[%c2_94, %c5_95] : memref<3x12xf32, #tpu.memory_space<smem>>
    %285 = vector.extract_strided_slice %43 {offsets = [2, 0, 0], sizes = [1, 16, 16], strides = [1, 1, 1]} : vector<3x16x16xf32> to vector<1x16x16xf32>
    %286 = vector.shape_cast %285 : vector<1x16x16xf32> to vector<16x16xf32>
    %287 = vector.broadcast %284 : f32 to vector<16x16xf32>
    %288 = arith.mulf %287, %286 : vector<16x16xf32>
    %289 = arith.addf %283, %288 : vector<16x16xf32>
    %c2_96 = arith.constant 2 : index
    %c8_97 = arith.constant 8 : index
    %290 = memref.load %arg2[%c2_96, %c8_97] : memref<3x12xf32, #tpu.memory_space<smem>>
    %291 = vector.extract_strided_slice %46 {offsets = [2, 0, 0], sizes = [1, 16, 16], strides = [1, 1, 1]} : vector<3x16x16xf32> to vector<1x16x16xf32>
    %292 = vector.shape_cast %291 : vector<1x16x16xf32> to vector<16x16xf32>
    %293 = vector.broadcast %290 : f32 to vector<16x16xf32>
    %294 = arith.mulf %293, %292 : vector<16x16xf32>
    %295 = arith.addf %289, %294 : vector<16x16xf32>
    %c2_98 = arith.constant 2 : index
    %c11_99 = arith.constant 11 : index
    %296 = memref.load %arg2[%c2_98, %c11_99] : memref<3x12xf32, #tpu.memory_space<smem>>
    %297 = vector.extract_strided_slice %50 {offsets = [2, 0, 0], sizes = [1, 16, 16], strides = [1, 1, 1]} : vector<3x16x16xf32> to vector<1x16x16xf32>
    %298 = vector.shape_cast %297 : vector<1x16x16xf32> to vector<16x16xf32>
    %299 = vector.broadcast %296 : f32 to vector<16x16xf32>
    %300 = arith.mulf %299, %298 : vector<16x16xf32>
    %301 = arith.addf %295, %300 : vector<16x16xf32>
    %302 = vector.shape_cast %301 : vector<16x16xf32> to vector<1x16x16xf32>
    %cst_100 = arith.constant dense<0.000000e+00> : vector<1xf32>
    %303 = vector.multi_reduction <add>, %302, %cst_100 [1, 2] : vector<1x16x16xf32> to vector<1xf32>
    %304 = vector.shape_cast %303 : vector<1xf32> to vector<1x1x1xf32>
    %305 = vector.extract %304[0, 0, 0] : f32 from vector<1x1x1xf32>
    %cst_101 = arith.constant 3.906250e-03 : f32
    %306 = arith.mulf %305, %cst_101 : f32
    %307 = vector.broadcast %306 : f32 to vector<16x16xf32>
    %308 = arith.mulf %301, %307 : vector<16x16xf32>
    %309 = vector.extract_strided_slice %1 {offsets = [2, 0, 0], sizes = [1, 16, 16], strides = [1, 1, 1]} : vector<3x16x16xf32> to vector<1x16x16xf32>
    %310 = vector.shape_cast %309 : vector<1x16x16xf32> to vector<16x16xf32>
    %311 = arith.addf %308, %310 : vector<16x16xf32>
    %c0_102 = arith.constant 0 : index
    %c2_103 = arith.constant 2 : index
    %c0_104 = arith.constant 0 : index
    %c0_105 = arith.constant 0 : index
    %312 = vector.load %arg4[%c0_102, %c2_103, %c0_104, %c0_105] : memref<1x3x16x16xf32, #tpu.memory_space<vmem>>, vector<1x1x16x16xf32>
    %313 = vector.shape_cast %312 : vector<1x1x16x16xf32> to vector<16x16xf32>
    %314 = vector.shape_cast %311 : vector<16x16xf32> to vector<1x1x16x16xf32>
    tpu.vector_store %arg4[%c0_102, %c2_103, %c0_104, %c0_105], %314 {strides = array<i32>} : memref<1x3x16x16xf32, #tpu.memory_space<vmem>>, vector<1x1x16x16xf32>,
    return
  }
  func.func @transform_0(%arg0: i32) -> (i32, i32, i32, i32) {
    %c0_i32 = arith.constant 0 : i32
    %c0_i32_0 = arith.constant 0 : i32
    %c0_i32_1 = arith.constant 0 : i32
    %c0_i32_2 = arith.constant 0 : i32
    return %arg0, %c0_i32, %c0_i32_0, %c0_i32_1 : i32, i32, i32, i32
  }
  func.func @transform_1(%arg0: i32) -> (i32, i32) {
    %c0_i32 = arith.constant 0 : i32
    %c0_i32_0 = arith.constant 0 : i32
    %c0_i32_1 = arith.constant 0 : i32
    return %c0_i32, %c0_i32_0 : i32, i32
  }
  func.func @transform_2(%arg0: i32) -> i32 {
    %c0_i32 = arith.constant 0 : i32
    %c0_i32_0 = arith.constant 0 : i32
    return %c0_i32 : i32
  }
  func.func @transform_3(%arg0: i32) -> (i32, i32, i32, i32) {
    %c0_i32 = arith.constant 0 : i32
    %c0_i32_0 = arith.constant 0 : i32
    %c0_i32_1 = arith.constant 0 : i32
    %c0_i32_2 = arith.constant 0 : i32
    return %arg0, %c0_i32, %c0_i32_0, %c0_i32_1 : i32, i32, i32, i32
  }
}

</mosaic_0001>

<llo_original>
// kernel: tpu_custom_call.1
$region0: #{tpu_custom_call.1}
  #allocation0 [shape = 'u32[]', space=smem, size = 0x4, offset = 0x4, fixed_abs, tag = 'smem constant byte address 0x4 - core index']
  #allocation1 [shape = 'u32[144,128]{1,0:T(1,128)}', space=vmem, size = 0x12000, scoped, tag = 'internal scratch']
  %s0 = inlined_call_operand.hbm [shape: f32[2,3,16,16], index: 0, kind: input, shape index: {}]
  %s1 = inlined_call_operand.hbm [shape: f32[3,12], index: 1, kind: input, shape index: {}]
  %s2 = inlined_call_operand.vmem [shape: f32[3], index: 2, kind: input, shape index: {}]
  %s3 = inlined_call_operand.hbm [shape: f32[2,3,16,16], index: 3, kind: output, shape index: {}]
  %s4 = sld [smem:[#allocation0]]
  $region57: #{tpu_custom_call.1} parent=0
    _
  %s6 = ssub.s32 1, %s4
  %s7 = scalar_select 0, %s6, %s4
  $region1: #{tpu_custom_call.1} parent=0
    #allocation2 [shape = 'u8[49152]{0}', space=vmem, size = 0xc000, scoped, tag = 'input window, operand 0']
    #allocation3 [shape = 's32[2]{0}', space=sflag, size = 0x8, scoped, tag = 'scoped memory for tpu_custom_call.1']
    #allocation4 [shape = 's32[2]{0}', space=sflag, size = 0x8, scoped, tag = 'scoped memory for tpu_custom_call.1']
    #allocation5 [shape = 's32[2]{0}', space=sflag, size = 0x8, scoped, tag = 'scoped memory for tpu_custom_call.1']
    #allocation6 [shape = 's32[2]{0}', space=sflag, size = 0x8, scoped, tag = 'scoped memory for tpu_custom_call.1']
    #allocation7 [shape = 'u8[2048]{0}', space=smem, size = 0x800, scoped, tag = 'input window, operand 1, single buffered']
    #allocation8 [shape = 'u8[512]{0}', space=smem, size = 0x200, scoped, tag = 'input window, operand 2, single buffered']
    #allocation9 [shape = 'u8[49152]{0}', space=vmem, size = 0xc000, scoped, tag = 'output window, operand 0']
    %8 = vsyncpa [#allocation3], 0
    %s9 = scalar_lea.sflag [#allocation3], 1
    %10 = vsyncpa %s9, 0
    %11 = vsyncpa [#allocation5], 0
    %12 = vsyncpa [#allocation6], 0
    %13 = vsyncpa [#allocation4], 0
    %s14 = scalar_lea.sflag [#allocation4], 1
    %15 = vsyncpa %s14, 0
    loop: start=0, step=1, limit=4
    $region2: #{tpu_custom_call.1} parent=1 // loop_pre_header
      _
    $region3: #{tpu_custom_call.1} parent=1 // loop_header
      %s17 = sphi 0, %s21
      %p18 = scmp.ge.s32.totalorder %s17, 4
      %s27 = sphi 0, %s29
      %s30 = sphi 0, %s27
      %s31 = sphi 0, %s30
      %s47 = sphi 0, %s31
      %s51 = sphi 0, %s51
      %s53 = sphi 0, %s51
      %s54 = sphi 0, %s53
      %s68 = sphi 0, %s54
      %s72 = sphi 0, %s72
      %s74 = sphi 0, %s72
      %s75 = sphi 0, %s74
      %s89 = sphi 0, %s75
      %s95 = sphi 0, %s97
      %s98 = sphi 0, %s95
      %s99 = sphi 0, %s98
      %s115 = sphi 0, %s99
    $region4: #{tpu_custom_call.1} parent=1 // loop_header_branch
      %20 = sbr.rel (%p18) target = $region8
    $region5: #{tpu_custom_call.1} parent=1 // loop_body
      %s22 = ssub.s32 %s17, 1
      %s23 = ssub.s32 %s17, 2
      %s24 = sadd.s32 %s17, 1
      %s25 = ssub.s32 %s17, %s24
      %p26 = scmp.eq.s32.totalorder %s25, 0
      %s28 = sadd.s32 %s27, 1
      %s29 = scalar_select %p26, %s27, %s28
      %p32 = pneg %p26
      %p33 = scmp.eq.s32.totalorder %s17, 1
      %p34 = por %p32, %p33
      %p35 = scmp.ne.s32.totalorder %s27, %s30
      %p36 = scmp.eq.s32.totalorder %s17, 0
      %p37 = por %p35, %p36
      %p38 = scmp.ne.s32.totalorder %s27, %s30
      %p39 = scmp.eq.s32.totalorder %s22, 1
      %p40 = por %p38, %p39
      %p41 = scmp.ne.s32.totalorder %s30, %s31
      %p42 = scmp.eq.s32.totalorder %s22, 0
      %p43 = por %p41, %p42
      %p44 = scmp.ne.s32.totalorder %s30, %s31
      %p45 = scmp.eq.s32.totalorder %s23, 1
      %p46 = por %p44, %p45
      %p48 = scmp.ne.s32.totalorder %s31, %s47
      %p49 = scmp.eq.s32.totalorder %s23, 0
      %p50 = por %p48, %p49
      %s52 = sadd.s32 %s51, 1
      %p55 = scmp.eq.s32.totalorder %s17, 1
      %p56 = scmp.ne.s32.totalorder %s51, %s53
      %p57 = scmp.eq.s32.totalorder %s17, 0
      %p58 = por %p56, %p57
      %p59 = scmp.ne.s32.totalorder %s51, %s53
      %p60 = scmp.eq.s32.totalorder %s22, 1
      %p61 = por %p59, %p60
      %p62 = scmp.ne.s32.totalorder %s53, %s54
      %p63 = scmp.eq.s32.totalorder %s22, 0
      %p64 = por %p62, %p63
      %p65 = scmp.ne.s32.totalorder %s53, %s54
      %p66 = scmp.eq.s32.totalorder %s23, 1
      %p67 = por %p65, %p66
      %p69 = scmp.ne.s32.totalorder %s54, %s68
      %p70 = scmp.eq.s32.totalorder %s23, 0
      %p71 = por %p69, %p70
      %s73 = sadd.s32 %s72, 1
      %p76 = scmp.eq.s32.totalorder %s17, 1
      %p77 = scmp.ne.s32.totalorder %s72, %s74
      %p78 = scmp.eq.s32.totalorder %s17, 0
      %p79 = por %p77, %p78
      %p80 = scmp.ne.s32.totalorder %s72, %s74
      %p81 = scmp.eq.s32.totalorder %s22, 1
      %p82 = por %p80, %p81
      %p83 = scmp.ne.s32.totalorder %s74, %s75
      %p84 = scmp.eq.s32.totalorder %s22, 0
      %p85 = por %p83, %p84
      %p86 = scmp.ne.s32.totalorder %s74, %s75
      %p87 = scmp.eq.s32.totalorder %s23, 1
      %p88 = por %p86, %p87
      %p90 = scmp.ne.s32.totalorder %s75, %s89
      %p91 = scmp.eq.s32.totalorder %s23, 0
      %p92 = por %p90, %p91
      %s93 = ssub.s32 %s17, %s24
      %p94 = scmp.eq.s32.totalorder %s93, 0
      %s96 = sadd.s32 %s95, 1
      %s97 = scalar_select %p94, %s95, %s96
      %p100 = pneg %p94
      %p101 = scmp.eq.s32.totalorder %s17, 1
      %p102 = por %p100, %p101
      %p103 = scmp.ne.s32.totalorder %s95, %s98
      %p104 = scmp.eq.s32.totalorder %s17, 0
      %p105 = por %p103, %p104
      %p106 = scmp.ne.s32.totalorder %s95, %s98
      %p107 = scmp.eq.s32.totalorder %s22, 1
      %p108 = por %p106, %p107
      %p109 = scmp.ne.s32.totalorder %s98, %s99
      %p110 = scmp.eq.s32.totalorder %s22, 0
      %p111 = por %p109, %p110
      %p112 = scmp.ne.s32.totalorder %s98, %s99
      %p113 = scmp.eq.s32.totalorder %s23, 1
      %p114 = por %p112, %p113
      %p116 = scmp.ne.s32.totalorder %s99, %s115
      %p117 = scmp.eq.s32.totalorder %s23, 0
      %p118 = por %p116, %p117
      %p119 = scmp.le.s32.totalorder 1, %s17
      %p120 = scmp.lt.s32.totalorder %s17, 3
      %p121 = pnand %p119, %p120
      %p122 = pneg %p121
      // Predicated region
      $region9: #{tpu_custom_call.1} parent=5 // pred_check
        _
      $region10: #{tpu_custom_call.1} parent=5 // pred_check_branch
        %124 = sbr.rel (%p121) target = $region12
      $region11: #{tpu_custom_call.1} parent=5 // pred_region
        %s125 = ssub.s32 %s17, 1
        // Predicated region
        $region13: #{tpu_custom_call.1} parent=11 // pred_check
          %p126 = pneg %p64
        $region14: #{tpu_custom_call.1} parent=11 // pred_check_branch
          %128 = sbr.rel (%p126) target = $region16
        $region15: #{tpu_custom_call.1} parent=11 // pred_region
          %s130 = ssub.s32 64, 64
          %131 = vsyncadd [#allocation5], %s130
          %134 = dma.hbm_to_smem %s1, 64, [#allocation7], [#allocation5]
        $region16: #{tpu_custom_call.1} parent=11 // pred_fallthru
          _
        // Predicated region
        $region17: #{tpu_custom_call.1} parent=11 // pred_check
          %p135 = pneg %p85
        $region18: #{tpu_custom_call.1} parent=11 // pred_check_branch
          %137 = sbr.rel (%p135) target = $region20
        $region19: #{tpu_custom_call.1} parent=11 // pred_region
          %s139 = ssub.s32 16, 16
          %140 = vsyncadd [#allocation6], %s139
          %s142 = sshll.u32 %s2, 4
          %s143 = int_to_ptr.vmem [resolvable:$true] %s142
          %145 = dma.vmem_to_smem %s143, 16, [#allocation8], [#allocation6]
        $region20: #{tpu_custom_call.1} parent=11 // pred_fallthru
          _
      $region12: #{tpu_custom_call.1} parent=5 // pred_fallthru
        _
      %p146 = scmp.lt.s32.totalorder %s17, 2
      // Predicated region
      $region21: #{tpu_custom_call.1} parent=5 // pred_check
        %p147 = pneg %p146
      $region22: #{tpu_custom_call.1} parent=5 // pred_check_branch
        %149 = sbr.rel (%p147) target = $region24
      $region23: #{tpu_custom_call.1} parent=5 // pred_region
        // Predicated region
        $region25: #{tpu_custom_call.1} parent=23 // pred_check
          %p150 = pneg %p37
        $region26: #{tpu_custom_call.1} parent=23 // pred_check_branch
          %152 = sbr.rel (%p150) target = $region28
        $region27: #{tpu_custom_call.1} parent=23 // pred_region
          %s153 = sand.u32 %s27, 1
          %s154 = scalar_lea.sflag [#allocation3], %s153
          %s155 = sand.u32 %s27, 1
          %s156 = smul.addr %s155, 48
          %s157 = scalar_lea.vmem [#allocation2], %s156
          %s159 = ssub.s32 768, 768
          %160 = vsyncadd %s154, %s159
          %s161 = smul.addr %s17, 6
          %s162 = smul.addr %s161, 128
          %s163 = scalar_lea.hbm %s0, %s162
          %s164 = sshll.u32 %s157, 4
          %s165 = int_to_ptr.vmem [resolvable:$true] %s164
          %170 = dma.hbm_to_vmem [thread:$0]  %s163, 768, %s165, %s154, 128, 128, 8
        $region28: #{tpu_custom_call.1} parent=23 // pred_fallthru
          _
      $region24: #{tpu_custom_call.1} parent=5 // pred_fallthru
        _
      %p171 = scmp.le.s32.totalorder 1, %s17
      %p172 = scmp.lt.s32.totalorder %s17, 3
      %p173 = pnand %p171, %p172
      %p174 = pneg %p173
      // Predicated region
      $region29: #{tpu_custom_call.1} parent=5 // pred_check
        _
      $region30: #{tpu_custom_call.1} parent=5 // pred_check_branch
        %176 = sbr.rel (%p173) target = $region32
      $region31: #{tpu_custom_call.1} parent=5 // pred_region
        %s177 = ssub.s32 %s17, 1
        %s178 = sand.u32 %s30, 1
        %s179 = scalar_lea.sflag [#allocation3], %s178
        %s180 = sand.u32 %s30, 1
        %s181 = smul.addr %s180, 48
        %s182 = scalar_lea.vmem [#allocation2], %s181
        // Predicated region
        $region33: #{tpu_custom_call.1} parent=31 // pred_check
          %p183 = pneg %p43
        $region34: #{tpu_custom_call.1} parent=31 // pred_check_branch
          %185 = sbr.rel (%p183) target = $region36
        $region35: #{tpu_custom_call.1} parent=31 // pred_region
          %186 = dma.done %s179, 768
        $region36: #{tpu_custom_call.1} parent=31 // pred_fallthru
          _
        // Predicated region
        $region37: #{tpu_custom_call.1} parent=31 // pred_check
          %p187 = pneg %p64
        $region38: #{tpu_custom_call.1} parent=31 // pred_check_branch
          %189 = sbr.rel (%p187) target = $region40
        $region39: #{tpu_custom_call.1} parent=31 // pred_region
          %190 = dma.done [#allocation5], 64
        $region40: #{tpu_custom_call.1} parent=31 // pred_fallthru
          _
        // Predicated region
        $region41: #{tpu_custom_call.1} parent=31 // pred_check
          %p191 = pneg %p85
        $region42: #{tpu_custom_call.1} parent=31 // pred_check_branch
          %193 = sbr.rel (%p191) target = $region44
        $region43: #{tpu_custom_call.1} parent=31 // pred_region
          %194 = dma.done [#allocation6], 16
        $region44: #{tpu_custom_call.1} parent=31 // pred_fallthru
          _
        %195 = sfence
        %s196 = sand.u32 %s30, 1
        %s197 = scalar_lea.sflag [#allocation3], %s196
        %s198 = sand.u32 %s30, 1
        %s199 = smul.addr %s198, 48
        %s200 = scalar_lea.vmem [#allocation2], %s199
        %p201 = pneg %p43
        %p202 = pneg %p40
        %p203 = pneg %p64
        %p204 = pneg %p61
        %p205 = pneg %p85
        %p206 = pneg %p82
        %p207 = pneg %p111
        %p208 = pneg %p108
        %s209 = sand.u32 %s98, 1
        %s210 = scalar_lea.sflag [#allocation4], %s209
        %s211 = sand.u32 %s98, 1
        %s212 = smul.addr %s211, 48
        %s213 = scalar_lea.vmem [#allocation9], %s212
        %v214 = vld [vmem:[%s182] sm:$0xff]
        %v215 = vld [vmem:[%s182 + $0x8] sm:$0xff]
        %v216 = vld [vmem:[%s182 + $0x10] sm:$0xff]
        %v217 = vld [vmem:[%s182 + $0x18] sm:$0xff]
        %v218 = vld [vmem:[%s182 + $0x20] sm:$0xff]
        %v219 = vld [vmem:[%s182 + $0x28] sm:$0xff]
        %v220 = vlaneseq
        %v221 = vand.u32 %v220, 127
        %v222 = vlaneseq
        %v223 = vshrl.u32 %v222, 7
        %v224 = vadd.s32 %v223, 8
        %vm225 = vcmp.gt.s32.totalorder %v221, 0
        %vm226 = vcmp.lt.s32.totalorder %v221, 15
        %vm227 = vcmp.gt.s32.totalorder %v223, 0
        %vm228 = vcmp.gt.s32.totalorder %v224, 0
        %vm229 = vcmp.lt.s32.totalorder %v223, 15
        %vm230 = vcmp.lt.s32.totalorder %v224, 15
        %vm231 = vcmask 1047680
        %232 = vrot.lane.b32.xlu0 %v214, 16
        %v233 = vpop.permute.xlu0 %232
        %v234 = vsel %vm231, %v233, %v214
        %235 = vrot.lane.b32.xlu0 %v215, 16
        %v236 = vpop.permute.xlu0 %235
        %v237 = vsel %vm231, %v236, %v215
        %238 = vrot.lane.b32.xlu0 %v216, 16
        %v239 = vpop.permute.xlu0 %238
        %v240 = vsel %vm231, %v239, %v216
        %241 = vrot.lane.b32.xlu0 %v217, 16
        %v242 = vpop.permute.xlu0 %241
        %v243 = vsel %vm231, %v242, %v217
        %244 = vrot.lane.b32.xlu0 %v218, 16
        %v245 = vpop.permute.xlu0 %244
        %v246 = vsel %vm231, %v245, %v218
        %247 = vrot.lane.b32.xlu0 %v219, 16
        %v248 = vpop.permute.xlu0 %247
        %v249 = vsel %vm231, %v248, %v219
        %250 = vrot.lane.b32.xlu0 %v234, 16
        %v251 = vpop.permute.xlu0 %250
        %252 = vrot.lane.b32.xlu0 %v237, 16
        %v253 = vpop.permute.xlu0 %252
        %254 = vrot.lane.b32.xlu0 %v240, 16
        %v255 = vpop.permute.xlu0 %254
        %256 = vrot.lane.b32.xlu0 %v243, 16
        %v257 = vpop.permute.xlu0 %256
        %258 = vrot.lane.b32.xlu0 %v246, 16
        %v259 = vpop.permute.xlu0 %258
        %260 = vrot.lane.b32.xlu0 %v249, 16
        %v261 = vpop.permute.xlu0 %260
        %v262 = vsel %vm231, %v251, %v214
        %v263 = vsel %vm231, %v253, %v215
        %v264 = vsel %vm231, %v255, %v216
        %v265 = vsel %vm231, %v257, %v217
        %v266 = vsel %vm231, %v259, %v218
        %v267 = vsel %vm231, %v261, %v219
        %274 = vrot.lane.b32.xlu0 %v262, 113
        %v275 = vpop.permute.xlu0 %274
        %276 = vrot.lane.b32.xlu0 %v263, 113
        %v277 = vpop.permute.xlu0 %276
        %278 = vrot.lane.b32.xlu0 %v264, 113
        %v279 = vpop.permute.xlu0 %278
        %280 = vrot.lane.b32.xlu0 %v265, 113
        %v281 = vpop.permute.xlu0 %280
        %282 = vrot.lane.b32.xlu0 %v266, 113
        %v283 = vpop.permute.xlu0 %282
        %284 = vrot.lane.b32.xlu0 %v267, 113
        %v285 = vpop.permute.xlu0 %284
        %v292 = vsel %vm225, %v275, -inf
        %v293 = vsel %vm225, %v277, -inf
        %v294 = vsel %vm225, %v279, -inf
        %v295 = vsel %vm225, %v281, -inf
        %v296 = vsel %vm225, %v283, -inf
        %v297 = vsel %vm225, %v285, -inf
        %298 = vrot.lane.b32.xlu0 %v262, 127
        %v299 = vpop.permute.xlu0 %298
        %300 = vrot.lane.b32.xlu0 %v263, 127
        %v301 = vpop.permute.xlu0 %300
        %302 = vrot.lane.b32.xlu0 %v264, 127
        %v303 = vpop.permute.xlu0 %302
        %304 = vrot.lane.b32.xlu0 %v265, 127
        %v305 = vpop.permute.xlu0 %304
        %306 = vrot.lane.b32.xlu0 %v266, 127
        %v307 = vpop.permute.xlu0 %306
        %308 = vrot.lane.b32.xlu0 %v267, 127
        %v309 = vpop.permute.xlu0 %308
        %v316 = vsel %vm226, %v299, -inf
        %v317 = vsel %vm226, %v301, -inf
        %v318 = vsel %vm226, %v303, -inf
        %v319 = vsel %vm226, %v305, -inf
        %v320 = vsel %vm226, %v307, -inf
        %v321 = vsel %vm226, %v309, -inf
        %v322 = vmax.f32 %v292, %v316
        %v323 = vmax.f32 %v293, %v317
        %v324 = vmax.f32 %v294, %v318
        %v325 = vmax.f32 %v295, %v319
        %v326 = vmax.f32 %v296, %v320
        %v327 = vmax.f32 %v297, %v321
        %v328 = vmax.f32 %v214, %v322
        %v329 = vmax.f32 %v215, %v323
        %v330 = vmax.f32 %v216, %v324
        %v331 = vmax.f32 %v217, %v325
        %v332 = vmax.f32 %v218, %v326
        %v333 = vmax.f32 %v219, %v327
        %v334 = vsel %vm225, %v275, 0.0
        %v335 = vsel %vm225, %v277, 0.0
        %v336 = vsel %vm225, %v279, 0.0
        %v337 = vsel %vm225, %v281, 0.0
        %v338 = vsel %vm225, %v283, 0.0
        %v339 = vsel %vm225, %v285, 0.0
        %v340 = vadd.f32 %v214, %v334
        %v341 = vadd.f32 %v215, %v335
        %v342 = vadd.f32 %v216, %v336
        %v343 = vadd.f32 %v217, %v337
        %v344 = vadd.f32 %v218, %v338
        %v345 = vadd.f32 %v219, %v339
        %v346 = vsel %vm226, %v299, 0.0
        %v347 = vsel %vm226, %v301, 0.0
        %v348 = vsel %vm226, %v303, 0.0
        %v349 = vsel %vm226, %v305, 0.0
        %v350 = vsel %vm226, %v307, 0.0
        %v351 = vsel %vm226, %v309, 0.0
        %v352 = vadd.f32 %v340, %v346
        %v353 = vadd.f32 %v341, %v347
        %v354 = vadd.f32 %v342, %v348
        %v355 = vadd.f32 %v343, %v349
        %v356 = vadd.f32 %v344, %v350
        %v357 = vadd.f32 %v345, %v351
        %v358 = vrot.slane %v328, 7
        %v359 = vrot.slane %v330, 7
        %v360 = vrot.slane %v332, 7
        %v361 = vrot.slane %v329, 7
        %v362 = vrot.slane %v331, 7
        %v363 = vrot.slane %v333, 7
        %vm364 = vcmp.lt.s32.totalorder %v223, 1
        %v365 = vsel %vm364, %v358, %v361
        %v366 = vsel %vm364, %v359, %v362
        %v367 = vsel %vm364, %v360, %v363
        %v368 = vsel %vm364, %v361, %v358
        %v369 = vsel %vm364, %v362, %v359
        %v370 = vsel %vm364, %v363, %v360
        %v371 = vrot.slane %v328, 1
        %v372 = vrot.slane %v330, 1
        %v373 = vrot.slane %v332, 1
        %v374 = vrot.slane %v329, 1
        %v375 = vrot.slane %v331, 1
        %v376 = vrot.slane %v333, 1
        %vm377 = vcmp.lt.s32.totalorder %v223, 7
        %v378 = vsel %vm377, %v371, %v374
        %v379 = vsel %vm377, %v372, %v375
        %v380 = vsel %vm377, %v373, %v376
        %v381 = vsel %vm377, %v374, %v371
        %v382 = vsel %vm377, %v375, %v372
        %v383 = vsel %vm377, %v376, %v373
        %v384 = vsel %vm227, %v368, -inf
        %v385 = vsel %vm228, %v365, -inf
        %v386 = vsel %vm227, %v369, -inf
        %v387 = vsel %vm228, %v366, -inf
        %v388 = vsel %vm227, %v370, -inf
        %v389 = vsel %vm228, %v367, -inf
        %v390 = vsel %vm229, %v378, -inf
        %v391 = vsel %vm230, %v381, -inf
        %v392 = vsel %vm229, %v379, -inf
        %v393 = vsel %vm230, %v382, -inf
        %v394 = vsel %vm229, %v380, -inf
        %v395 = vsel %vm230, %v383, -inf
        %v396 = vmax.f32 %v384, %v390
        %v397 = vmax.f32 %v385, %v391
        %v398 = vmax.f32 %v386, %v392
        %v399 = vmax.f32 %v387, %v393
        %v400 = vmax.f32 %v388, %v394
        %v401 = vmax.f32 %v389, %v395
        %v402 = vmax.f32 %v328, %v396
        %v403 = vmax.f32 %v329, %v397
        %v404 = vmax.f32 %v330, %v398
        %v405 = vmax.f32 %v331, %v399
        %v406 = vmax.f32 %v332, %v400
        %v407 = vmax.f32 %v333, %v401
        %v408 = vrot.slane %v352, 7
        %v409 = vrot.slane %v354, 7
        %v410 = vrot.slane %v356, 7
        %v411 = vrot.slane %v353, 7
        %v412 = vrot.slane %v355, 7
        %v413 = vrot.slane %v357, 7
        %v414 = vsel %vm364, %v408, %v411
        %v415 = vsel %vm364, %v409, %v412
        %v416 = vsel %vm364, %v410, %v413
        %v417 = vsel %vm364, %v411, %v408
        %v418 = vsel %vm364, %v412, %v409
        %v419 = vsel %vm364, %v413, %v410
        %v420 = vrot.slane %v352, 1
        %v421 = vrot.slane %v354, 1
        %v422 = vrot.slane %v356, 1
        %v423 = vrot.slane %v353, 1
        %v424 = vrot.slane %v355, 1
        %v425 = vrot.slane %v357, 1
        %v426 = vsel %vm377, %v420, %v423
        %v427 = vsel %vm377, %v421, %v424
        %v428 = vsel %vm377, %v422, %v425
        %v429 = vsel %vm377, %v423, %v420
        %v430 = vsel %vm377, %v424, %v421
        %v431 = vsel %vm377, %v425, %v422
        %v432 = vsel %vm227, %v417, 0.0
        %v433 = vsel %vm228, %v414, 0.0
        %v434 = vsel %vm227, %v418, 0.0
        %v435 = vsel %vm228, %v415, 0.0
        %v436 = vsel %vm227, %v419, 0.0
        %v437 = vsel %vm228, %v416, 0.0
        %v438 = vadd.f32 %v352, %v432
        %v439 = vadd.f32 %v353, %v433
        %v440 = vadd.f32 %v354, %v434
        %v441 = vadd.f32 %v355, %v435
        %v442 = vadd.f32 %v356, %v436
        %v443 = vadd.f32 %v357, %v437
        %v444 = vsel %vm229, %v426, 0.0
        %v445 = vsel %vm230, %v429, 0.0
        %v446 = vsel %vm229, %v427, 0.0
        %v447 = vsel %vm230, %v430, 0.0
        %v448 = vsel %vm229, %v428, 0.0
        %v449 = vsel %vm230, %v431, 0.0
        %v450 = vadd.f32 %v438, %v444
        %v451 = vadd.f32 %v439, %v445
        %v452 = vadd.f32 %v440, %v446
        %v453 = vadd.f32 %v441, %v447
        %v454 = vadd.f32 %v442, %v448
        %v455 = vadd.f32 %v443, %v449
        %v456 = vmul.f32 %v450, 0.11111111
        %v457 = vmul.f32 %v451, 0.11111111
        %v458 = vmul.f32 %v452, 0.11111111
        %v459 = vmul.f32 %v453, 0.11111111
        %v460 = vmul.f32 %v454, 0.11111111
        %v461 = vmul.f32 %v455, 0.11111111
        %v462 = vsub.f32 %v214, %v275
        %v463 = vsub.f32 %v215, %v277
        %v464 = vsub.f32 %v216, %v279
        %v465 = vsub.f32 %v217, %v281
        %v466 = vsub.f32 %v218, %v283
        %v467 = vsub.f32 %v219, %v285
        %v468 = vsel %vm225, %v462, 0.0
        %v469 = vsel %vm225, %v463, 0.0
        %v470 = vsel %vm225, %v464, 0.0
        %v471 = vsel %vm225, %v465, 0.0
        %v472 = vsel %vm225, %v466, 0.0
        %v473 = vsel %vm225, %v467, 0.0
        %v474 = vrot.slane %v214, 7
        %v475 = vrot.slane %v216, 7
        %v476 = vrot.slane %v218, 7
        %v477 = vrot.slane %v215, 7
        %v478 = vrot.slane %v217, 7
        %v479 = vrot.slane %v219, 7
        %v480 = vsel %vm364, %v474, %v477
        %v481 = vsel %vm364, %v475, %v478
        %v482 = vsel %vm364, %v476, %v479
        %v483 = vsel %vm364, %v477, %v474
        %v484 = vsel %vm364, %v478, %v475
        %v485 = vsel %vm364, %v479, %v476
        %v486 = vsub.f32 %v214, %v483
        %v487 = vsub.f32 %v215, %v480
        %v488 = vsub.f32 %v216, %v484
        %v489 = vsub.f32 %v217, %v481
        %v490 = vsub.f32 %v218, %v485
        %v491 = vsub.f32 %v219, %v482
        %v492 = vsel %vm227, %v486, 0.0
        %v493 = vsel %vm228, %v487, 0.0
        %v494 = vsel %vm227, %v488, 0.0
        %v495 = vsel %vm228, %v489, 0.0
        %v496 = vsel %vm227, %v490, 0.0
        %v497 = vsel %vm228, %v491, 0.0
        %s498 = sld [smem:[#allocation8]]
        %s499 = sadd.f32 %s498, 0.0
        %s500 = sld [smem:[#allocation7]]
        %v501 = vstv %s500
        %v502 = vmul.f32 %v501, %v402
        %v503 = vmul.f32 %v501, %v403
        %v504 = vstv %s499
        %v505 = vadd.f32 %v504, %v502
        %v506 = vadd.f32 %v504, %v503
        %s507 = sld [smem:[#allocation7 + $0x3]]
        %v508 = vstv %s507
        %v509 = vmul.f32 %v508, %v456
        %v510 = vmul.f32 %v508, %v457
        %v511 = vadd.f32 %v505, %v509
        %v512 = vadd.f32 %v506, %v510
        %s513 = sld [smem:[#allocation7 + $0x6]]
        %v514 = vstv %s513
        %v515 = vmul.f32 %v514, %v468
        %v516 = vmul.f32 %v514, %v469
        %v517 = vadd.f32 %v511, %v515
        %v518 = vadd.f32 %v512, %v516
        %s519 = sld [smem:[#allocation7 + $0x9]]
        %v520 = vstv %s519
        %v521 = vmul.f32 %v520, %v492
        %v522 = vmul.f32 %v520, %v493
        %v523 = vadd.f32 %v517, %v521
        %v524 = vadd.f32 %v518, %v522
        %s525 = sld [smem:[#allocation7 + $0x1]]
        %v526 = vstv %s525
        %v527 = vmul.f32 %v526, %v404
        %v528 = vmul.f32 %v526, %v405
        %v529 = vadd.f32 %v523, %v527
        %v530 = vadd.f32 %v524, %v528
        %s531 = sld [smem:[#allocation7 + $0x4]]
        %v532 = vstv %s531
        %v533 = vmul.f32 %v532, %v458
        %v534 = vmul.f32 %v532, %v459
        %v535 = vadd.f32 %v529, %v533
        %v536 = vadd.f32 %v530, %v534
        %s537 = sld [smem:[#allocation7 + $0x7]]
        %v538 = vstv %s537
        %v539 = vmul.f32 %v538, %v470
        %v540 = vmul.f32 %v538, %v471
        %v541 = vadd.f32 %v535, %v539
        %v542 = vadd.f32 %v536, %v540
        %s543 = sld [smem:[#allocation7 + $0xa]]
        %v544 = vstv %s543
        %v545 = vmul.f32 %v544, %v494
        %v546 = vmul.f32 %v544, %v495
        %v547 = vadd.f32 %v541, %v545
        %v548 = vadd.f32 %v542, %v546
        %s549 = sld [smem:[#allocation7 + $0x2]]
        %v550 = vstv %s549
        %v551 = vmul.f32 %v550, %v406
        %v552 = vmul.f32 %v550, %v407
        %v553 = vadd.f32 %v547, %v551
        %v554 = vadd.f32 %v548, %v552
        %s555 = sld [smem:[#allocation7 + $0x5]]
        %v556 = vstv %s555
        %v557 = vmul.f32 %v556, %v460
        %v558 = vmul.f32 %v556, %v461
        %v559 = vadd.f32 %v553, %v557
        %v560 = vadd.f32 %v554, %v558
        %s561 = sld [smem:[#allocation7 + $0x8]]
        %v562 = vstv %s561
        %v563 = vmul.f32 %v562, %v472
        %v564 = vmul.f32 %v562, %v473
        %v565 = vadd.f32 %v559, %v563
        %v566 = vadd.f32 %v560, %v564
        %s567 = sld [smem:[#allocation7 + $0xb]]
        %v568 = vstv %s567
        %v569 = vmul.f32 %v568, %v496
        %v570 = vmul.f32 %v568, %v497
        %v571 = vadd.f32 %v565, %v569
        %v572 = vadd.f32 %v566, %v570
        %vm573 = vcmask 130048
        %v574 = vsel %vm573, %v571, 0.0
        %v575 = vsel %vm573, %v572, 0.0
        %v576 = vadd.f32 %v574, %v575
        %577 = vadd.xlane.f32.xlu0 %v576
        %v578 = vpop.xlane.xlu0 %577
        %v579 = vrot.slane %v578, 4
        %v580 = vadd.f32 %v578, %v579
        %v581 = vrot.slane %v580, 2
        %v582 = vadd.f32 %v580, %v581
        %v583 = vrot.slane %v582, 1
        %v584 = vadd.f32 %v582, %v583
        %s585 = vtos %v584
        %s586 = smul.f32 %s585, 0.00390625
        %v587 = vstv %s586
        %v588 = vmul.f32 %v571, %v587
        %v589 = vmul.f32 %v572, %v587
        %v590 = vadd.f32 %v588, %v214
        %v591 = vadd.f32 %v589, %v215
        %592 = vst.msk [vmem:[%s213] sm:$0xff] %vm573, %v590
        %593 = vst.msk [vmem:[%s213 + $0x8] sm:$0xff] %vm573, %v591
        %s594 = sld [smem:[#allocation8 + $0x1]]
        %s595 = sadd.f32 %s594, 0.0
        %s596 = sld [smem:[#allocation7 + $0x80]]
        %v597 = vstv %s596
        %v598 = vmul.f32 %v597, %v402
        %v599 = vmul.f32 %v597, %v403
        %v600 = vstv %s595
        %v601 = vadd.f32 %v600, %v598
        %v602 = vadd.f32 %v600, %v599
        %s603 = sld [smem:[#allocation7 + $0x83]]
        %v604 = vstv %s603
        %v605 = vmul.f32 %v604, %v456
        %v606 = vmul.f32 %v604, %v457
        %v607 = vadd.f32 %v601, %v605
        %v608 = vadd.f32 %v602, %v606
        %s609 = sld [smem:[#allocation7 + $0x86]]
        %v610 = vstv %s609
        %v611 = vmul.f32 %v610, %v468
        %v612 = vmul.f32 %v610, %v469
        %v613 = vadd.f32 %v607, %v611
        %v614 = vadd.f32 %v608, %v612
        %s615 = sld [smem:[#allocation7 + $0x89]]
        %v616 = vstv %s615
        %v617 = vmul.f32 %v616, %v492
        %v618 = vmul.f32 %v616, %v493
        %v619 = vadd.f32 %v613, %v617
        %v620 = vadd.f32 %v614, %v618
        %s621 = sld [smem:[#allocation7 + $0x81]]
        %v622 = vstv %s621
        %v623 = vmul.f32 %v622, %v404
        %v624 = vmul.f32 %v622, %v405
        %v625 = vadd.f32 %v619, %v623
        %v626 = vadd.f32 %v620, %v624
        %s627 = sld [smem:[#allocation7 + $0x84]]
        %v628 = vstv %s627
        %v629 = vmul.f32 %v628, %v458
        %v630 = vmul.f32 %v628, %v459
        %v631 = vadd.f32 %v625, %v629
        %v632 = vadd.f32 %v626, %v630
        %s633 = sld [smem:[#allocation7 + $0x87]]
        %v634 = vstv %s633
        %v635 = vmul.f32 %v634, %v470
        %v636 = vmul.f32 %v634, %v471
        %v637 = vadd.f32 %v631, %v635
        %v638 = vadd.f32 %v632, %v636
        %s639 = sld [smem:[#allocation7 + $0x8a]]
        %v640 = vstv %s639
        %v641 = vmul.f32 %v640, %v494
        %v642 = vmul.f32 %v640, %v495
        %v643 = vadd.f32 %v637, %v641
        %v644 = vadd.f32 %v638, %v642
        %s645 = sld [smem:[#allocation7 + $0x82]]
        %v646 = vstv %s645
        %v647 = vmul.f32 %v646, %v406
        %v648 = vmul.f32 %v646, %v407
        %v649 = vadd.f32 %v643, %v647
        %v650 = vadd.f32 %v644, %v648
        %s651 = sld [smem:[#allocation7 + $0x85]]
        %v652 = vstv %s651
        %v653 = vmul.f32 %v652, %v460
        %v654 = vmul.f32 %v652, %v461
        %v655 = vadd.f32 %v649, %v653
        %v656 = vadd.f32 %v650, %v654
        %s657 = sld [smem:[#allocation7 + $0x88]]
        %v658 = vstv %s657
        %v659 = vmul.f32 %v658, %v472
        %v660 = vmul.f32 %v658, %v473
        %v661 = vadd.f32 %v655, %v659
        %v662 = vadd.f32 %v656, %v660
        %s663 = sld [smem:[#allocation7 + $0x8b]]
        %v664 = vstv %s663
        %v665 = vmul.f32 %v664, %v496
        %v666 = vmul.f32 %v664, %v497
        %v667 = vadd.f32 %v661, %v665
        %v668 = vadd.f32 %v662, %v666
        %v669 = vsel %vm573, %v667, 0.0
        %v670 = vsel %vm573, %v668, 0.0
        %v671 = vadd.f32 %v669, %v670
        %672 = vadd.xlane.f32.xlu0 %v671
        %v673 = vpop.xlane.xlu0 %672
        %v674 = vrot.slane %v673, 4
        %v675 = vadd.f32 %v673, %v674
        %v676 = vrot.slane %v675, 2
        %v677 = vadd.f32 %v675, %v676
        %v678 = vrot.slane %v677, 1
        %v679 = vadd.f32 %v677, %v678
        %s680 = vtos %v679
        %s681 = smul.f32 %s680, 0.00390625
        %v682 = vstv %s681
        %v683 = vmul.f32 %v667, %v682
        %v684 = vmul.f32 %v668, %v682
        %v685 = vadd.f32 %v683, %v216
        %v686 = vadd.f32 %v684, %v217
        %s687 = scalar_lea.vmem %s213, 16 [#allocation9]
        %688 = vst.msk [vmem:[%s687] sm:$0xff] %vm573, %v685
        %689 = vst.msk [vmem:[%s687 + $0x8] sm:$0xff] %vm573, %v686
        %s690 = sld [smem:[#allocation8 + $0x2]]
        %s691 = sadd.f32 %s690, 0.0
        %s692 = sld [smem:[#allocation7 + $0x100]]
        %v693 = vstv %s692
        %v694 = vmul.f32 %v693, %v402
        %v695 = vmul.f32 %v693, %v403
        %v696 = vstv %s691
        %v697 = vadd.f32 %v696, %v694
        %v698 = vadd.f32 %v696, %v695
        %s699 = sld [smem:[#allocation7 + $0x103]]
        %v700 = vstv %s699
        %v701 = vmul.f32 %v700, %v456
        %v702 = vmul.f32 %v700, %v457
        %v703 = vadd.f32 %v697, %v701
        %v704 = vadd.f32 %v698, %v702
        %s705 = sld [smem:[#allocation7 + $0x106]]
        %v706 = vstv %s705
        %v707 = vmul.f32 %v706, %v468
        %v708 = vmul.f32 %v706, %v469
        %v709 = vadd.f32 %v703, %v707
        %v710 = vadd.f32 %v704, %v708
        %s711 = sld [smem:[#allocation7 + $0x109]]
        %v712 = vstv %s711
        %v713 = vmul.f32 %v712, %v492
        %v714 = vmul.f32 %v712, %v493
        %v715 = vadd.f32 %v709, %v713
        %v716 = vadd.f32 %v710, %v714
        %s717 = sld [smem:[#allocation7 + $0x101]]
        %v718 = vstv %s717
        %v719 = vmul.f32 %v718, %v404
        %v720 = vmul.f32 %v718, %v405
        %v721 = vadd.f32 %v715, %v719
        %v722 = vadd.f32 %v716, %v720
        %s723 = sld [smem:[#allocation7 + $0x104]]
        %v724 = vstv %s723
        %v725 = vmul.f32 %v724, %v458
        %v726 = vmul.f32 %v724, %v459
        %v727 = vadd.f32 %v721, %v725
        %v728 = vadd.f32 %v722, %v726
        %s729 = sld [smem:[#allocation7 + $0x107]]
        %v730 = vstv %s729
        %v731 = vmul.f32 %v730, %v470
        %v732 = vmul.f32 %v730, %v471
        %v733 = vadd.f32 %v727, %v731
        %v734 = vadd.f32 %v728, %v732
        %s735 = sld [smem:[#allocation7 + $0x10a]]
        %v736 = vstv %s735
        %v737 = vmul.f32 %v736, %v494
        %v738 = vmul.f32 %v736, %v495
        %v739 = vadd.f32 %v733, %v737
        %v740 = vadd.f32 %v734, %v738
        %s741 = sld [smem:[#allocation7 + $0x102]]
        %v742 = vstv %s741
        %v743 = vmul.f32 %v742, %v406
        %v744 = vmul.f32 %v742, %v407
        %v745 = vadd.f32 %v739, %v743
        %v746 = vadd.f32 %v740, %v744
        %s747 = sld [smem:[#allocation7 + $0x105]]
        %v748 = vstv %s747
        %v749 = vmul.f32 %v748, %v460
        %v750 = vmul.f32 %v748, %v461
        %v751 = vadd.f32 %v745, %v749
        %v752 = vadd.f32 %v746, %v750
        %s753 = sld [smem:[#allocation7 + $0x108]]
        %v754 = vstv %s753
        %v755 = vmul.f32 %v754, %v472
        %v756 = vmul.f32 %v754, %v473
        %v757 = vadd.f32 %v751, %v755
        %v758 = vadd.f32 %v752, %v756
        %s759 = sld [smem:[#allocation7 + $0x10b]]
        %v760 = vstv %s759
        %v761 = vmul.f32 %v760, %v496
        %v762 = vmul.f32 %v760, %v497
        %v763 = vadd.f32 %v757, %v761
        %v764 = vadd.f32 %v758, %v762
        %v765 = vsel %vm573, %v763, 0.0
        %v766 = vsel %vm573, %v764, 0.0
        %v767 = vadd.f32 %v765, %v766
        %768 = vadd.xlane.f32.xlu0 %v767
        %v769 = vpop.xlane.xlu0 %768
        %v770 = vrot.slane %v769, 4
        %v771 = vadd.f32 %v769, %v770
        %v772 = vrot.slane %v771, 2
        %v773 = vadd.f32 %v771, %v772
        %v774 = vrot.slane %v773, 1
        %v775 = vadd.f32 %v773, %v774
        %s776 = vtos %v775
        %s777 = smul.f32 %s776, 0.00390625
        %v778 = vstv %s777
        %v779 = vmul.f32 %v763, %v778
        %v780 = vmul.f32 %v764, %v778
        %v781 = vadd.f32 %v779, %v218
        %v782 = vadd.f32 %v780, %v219
        %s783 = scalar_lea.vmem %s213, 32 [#allocation9]
        %784 = vst.msk [vmem:[%s783] sm:$0xff] %vm573, %v781
        %785 = vst.msk [vmem:[%s783 + $0x8] sm:$0xff] %vm573, %v782
        %s786 = sand.u32 %s98, 1
        %s787 = scalar_lea.sflag [#allocation4], %s786
        %s788 = sand.u32 %s98, 1
        %s789 = smul.addr %s788, 48
        %s790 = scalar_lea.vmem [#allocation9], %s789
        // Predicated region
        $region45: #{tpu_custom_call.1} parent=31 // pred_check
          %p791 = pneg %p108
        $region46: #{tpu_custom_call.1} parent=31 // pred_check_branch
          %793 = sbr.rel (%p791) target = $region48
        $region47: #{tpu_custom_call.1} parent=31 // pred_region
          %s795 = ssub.s32 768, 768
          %796 = vsyncadd %s787, %s795
          %s797 = smul.addr %s22, 6
          %s798 = smul.addr %s797, 128
          %s799 = scalar_lea.hbm %s3, %s798
          %s800 = sshll.u32 %s790, 4
          %s801 = int_to_ptr.vmem [resolvable:$true] %s800
          %806 = dma.vmem_to_hbm [thread:$0]  %s801, 768, %s799, %s787, 128, 128, 8
        $region48: #{tpu_custom_call.1} parent=31 // pred_fallthru
          _
      $region32: #{tpu_custom_call.1} parent=5 // pred_fallthru
        _
      %p807 = scmp.le.s32.totalorder 2, %s17
      // Predicated region
      $region49: #{tpu_custom_call.1} parent=5 // pred_check
        %p808 = pneg %p807
      $region50: #{tpu_custom_call.1} parent=5 // pred_check_branch
        %810 = sbr.rel (%p808) target = $region52
      $region51: #{tpu_custom_call.1} parent=5 // pred_region
        %s811 = ssub.s32 %s17, 2
        // Predicated region
        $region53: #{tpu_custom_call.1} parent=51 // pred_check
          %p812 = pneg %p114
        $region54: #{tpu_custom_call.1} parent=51 // pred_check_branch
          %814 = sbr.rel (%p812) target = $region56
        $region55: #{tpu_custom_call.1} parent=51 // pred_region
          %s815 = sand.u32 %s99, 1
          %s816 = scalar_lea.sflag [#allocation4], %s815
          %s817 = sand.u32 %s99, 1
          %s818 = smul.addr %s817, 48
          %s819 = scalar_lea.vmem [#allocation9], %s818
          %820 = dma.done %s816, 768
        $region56: #{tpu_custom_call.1} parent=51 // pred_fallthru
          _
      $region52: #{tpu_custom_call.1} parent=5 // pred_fallthru
        _
    $region6: #{tpu_custom_call.1} parent=1 // loop_footer
      %s21 = sadd.s32 1, %s17
    $region7: #{tpu_custom_call.1} parent=1 // loop_footer_branch
      %16 = sbr.rel target = $region3
    $region8: #{tpu_custom_call.1} parent=1 // loop_exit
      _
    %821 = vsyncpa [#allocation3], 1
    %s822 = scalar_lea.sflag [#allocation3], 1
    %823 = vsyncpa %s822, 1
    %824 = vsyncpa [#allocation4], 1
    %s825 = scalar_lea.sflag [#allocation4], 1
    %826 = vsyncpa %s825, 1
    %827 = vsyncpa [#allocation5], 1
    %s828 = scalar_lea.sflag [#allocation5], 1
    %829 = vsyncpa %s828, 1
    %830 = vsyncpa [#allocation6], 1
    %s831 = scalar_lea.sflag [#allocation6], 1
    %832 = vsyncpa %s831, 1

</llo_original>
